<compile_context>
chip_gen: v6e
topology: v6e:2x2x1
jax: 0.10.0
libtpu: 0.0.40
codegen_flags: <defaults>
</compile_context>

<pallas_src>
import jax
import jax.numpy as jnp
import numpy as np
from jax.experimental import pallas as pl
from jax.experimental.pallas import tpu as pltpu


# --------------------------------------------------------------------------
# Kernel
# --------------------------------------------------------------------------
def _seqwise_linear_kernel(x_ref, w_ref, b_ref, o_ref):
    # x_ref: (TM, Hin)   row tile of packed data, native dtype (cast here, in VMEM)
    # w_ref: (Hin, TN)   weight stripe in compute dtype (resident when TN == Hout)
    # b_ref: (1,  TN)    f32 bias stripe
    # o_ref: (TM, TN)    output tile
    x = x_ref[...].astype(w_ref.dtype)
    acc = jnp.dot(x, w_ref[...], preferred_element_type=jnp.float32)
    o_ref[...] = (acc + b_ref[...]).astype(o_ref.dtype)


# --------------------------------------------------------------------------
# Wrapper-side planning helpers
# --------------------------------------------------------------------------
def _vmem_capacity_bytes():
    try:
        return int(pltpu.get_tpu_info().vmem_capacity_bytes)
    except Exception:
        # Conservative fallback: v7x per-TensorCore VMEM.
        return 64 * 1024 * 1024


def _choose_tiles(T, Hin, Hout, x_bytes, w_bytes, o_bytes, budget):
    """Pick (tm, tn): row tile and H_out stripe width.

    Prefers a fully VMEM-resident weight (tn == Hout) with a large row tile;
    falls back to N-striping the weight (tn in {512, 256, 128}) when the
    resident weight would not fit the generation-aware VMEM budget.
    """
    row_cands = (1024, 512, 256, 128, 64, 32, 16, 8)
    tn_cands = [Hout] + [tn for tn in (512, 256, 128) if tn < Hout]

    def vmem_use(tm, tn):
        # Conservative: assume every operand is double-buffered by the pipeline.
        return 2 * (tm * Hin * x_bytes      # x row tile
                    + Hin * tn * w_bytes    # weight stripe
                    + tm * tn * o_bytes     # output tile
                    + tn * 4)               # f32 bias stripe

    # Pass 1: insist on a big row tile (>=128 rows) to amortise per-step cost.
    for tn in tn_cands:
        for tm in row_cands:
            if tm >= 128 and vmem_use(tm, tn) <= budget:
                return tm, tn
    # Pass 2: take anything that fits.
    for tn in tn_cands:
        for tm in row_cands:
            if vmem_use(tm, tn) <= budget:
                return tm, tn
    # Last resort (pathological shapes): smallest tiles.
    return 8, tn_cands[-1]


# --------------------------------------------------------------------------
# y = data @ w + b over the flat packed rows
# --------------------------------------------------------------------------
def sequence_wise_linear(data, w, b, *, compute_dtype=jnp.bfloat16, out_dtype=None):
    """Apply y = data @ w + b on packed data via a tiled Pallas kernel.

    data: (T_total, H_in)   flat packed timesteps (PackedSequence.data)
    w:    (H_in, H_out)     torch Linear weight, transposed
    b:    (H_out,) or (1, H_out)
    compute_dtype: MXU input dtype (bf16 default; pass jnp.float32 for full
                   torch-matching precision).  Accumulation is always f32.
    out_dtype: output store dtype (defaults to data.dtype).
    """
    T, Hin = data.shape
    assert w.shape[0] == Hin
    Hout = w.shape[1]
    out_dtype = np.dtype(out_dtype) if out_dtype is not None else np.dtype(data.dtype)

    w_c = w.astype(compute_dtype)
    b_c = jnp.asarray(b).astype(jnp.float32).reshape(1, Hout)

    # Generation-aware VMEM plan (128 MiB v5e/v6e, 64 MiB per TC on v7x).
    cap = _vmem_capacity_bytes()
    budget = min(int(cap * 0.70), 96 * 1024 * 1024)
    vmem_limit = int(min(cap, budget + 16 * 1024 * 1024))

    x_bytes = np.dtype(data.dtype).itemsize
    w_bytes = np.dtype(compute_dtype).itemsize
    o_bytes = out_dtype.itemsize

    tm, tn = _choose_tiles(T, Hin, Hout, x_bytes, w_bytes, o_bytes, budget)

    # v7x megacore: make sure the parallel row axis has >= 2 steps when T allows,
    # so both TensorCores get work (harmless on single-TC v5e/v6e).
    while tm > 8 and pl.cdiv(T, tm) < 2:
        tm //= 2

    n_rows = pl.cdiv(T, tm)
    n_cols = pl.cdiv(Hout, tn)
    grid = (n_rows, n_cols)

    cost = pl.CostEstimate(
        flops=2 * T * Hin * Hout,
        transcendentals=0,
        bytes_accessed=(T * Hin * x_bytes                                   # x read once
                        + (n_rows if n_cols > 1 else 1) * Hin * Hout * w_bytes
                        + T * Hout * o_bytes                                # y write
                        + Hout * 4),                                        # bias
    )

    out = pl.pallas_call(
        _seqwise_linear_kernel,
        out_shape=jax.ShapeDtypeStruct((T, Hout), out_dtype),
        grid=grid,
        in_specs=[
            pl.BlockSpec((tm, Hin), lambda i, n: (i, 0)),   # x row tile, resident across n
            pl.BlockSpec((Hin, tn), lambda i, n: (0, n)),   # weight stripe (resident if tn==Hout)
            pl.BlockSpec((1, tn), lambda i, n: (0, n)),     # bias stripe
        ],
        out_specs=pl.BlockSpec((tm, tn), lambda i, n: (i, n)),
        compiler_params=pltpu.CompilerParams(
            dimension_semantics=("parallel", "parallel"),
            vmem_limit_bytes=vmem_limit,
        ),
        cost_estimate=cost,
    )(data, w_c, b_c)

    return out


def sequence_wise_forward(packed_data, batch_sizes, w, b, *,
                          compute_dtype=jnp.bfloat16, out_dtype=None):
    """Pallas equivalent of SequenceWise(nn.Linear(H_in, H_out)).forward.

    Returns (data, batch_sizes), mirroring PackedSequence(data, batch_sizes).
    """
    out_data = sequence_wise_linear(packed_data, w, b,
                                    compute_dtype=compute_dtype,
                                    out_dtype=out_dtype)
    # TODO(synk): PackedSequence re-wrapping is host-side metadata only; the
    # batch_sizes tensor is returned unchanged rather than wrapped in a torch object.
    return out_data, batch_sizes


# --------------------------------------------------------------------------
# Demo / self-check
# --------------------------------------------------------------------------
if __name__ == "__main__":
    key = jax.random.PRNGKey(0)
    k_x, k_w, k_b = jax.random.split(key, 3)

    # Packed-sequence example: batch of 2 sequences, lengths 5 and 3.
    # Per-timestep batch sizes = [2, 2, 2, 1, 1]  -> T_total = 8 packed rows.
    batch_sizes = jnp.array([2, 2, 2, 1, 1], dtype=jnp.int32)
    T_total = 8
    H_in, H_out = 32, 32

    # Packed data (what PyTorch exposes as PackedSequence.data).
    x_data = jax.random.normal(k_x, (T_total, H_in), dtype=jnp.float32)

    # Deterministic Linear(H_in, H_out) params (torch weight is (H_out, H_in);
    # we store the transpose so the kernel computes data @ W).  Bias is the
    # torch-style (H_out,) vector.
    w = (jax.random.normal(k_w, (H_in, H_out), dtype=jnp.float32)
         / jnp.sqrt(jnp.float32(H_in)))
    b = jax.random.normal(k_b, (H_out,), dtype=jnp.float32) * 0.1

    out_data, out_batch_sizes = sequence_wise_forward(x_data, batch_sizes, w, b)
    jax.block_until_ready(out_data)

    # Reference in plain JAX, matching the kernel's bf16 inputs / f32 accumulate.
    ref = (jnp.dot(x_data.astype(jnp.bfloat16).astype(jnp.float32),
                   w.astype(jnp.bfloat16).astype(jnp.float32))
           + b[None, :])
    assert out_data.shape == (T_total, H_out)
    assert out_data.dtype == x_data.dtype
    assert bool(jnp.all(out_batch_sizes == batch_sizes))
    assert jnp.allclose(out_data, ref, atol=1e-2, rtol=1e-2)

    print("KERNEL_OK")
</pallas_src>

<mosaic_0001>
module attributes {stable_mosaic.version = 11 : i64} {
  func.func @_seqwise_linear_kernel(%arg0: i32, %arg1: i32, %arg2: memref<8x32xf32, #tpu.memory_space<vmem>>, %arg3: memref<32x32xbf16, #tpu.memory_space<vmem>>, %arg4: memref<1x32xf32, #tpu.memory_space<vmem>>, %arg5: memref<8x32xf32, #tpu.memory_space<vmem>>) attributes {dimension_semantics = [#tpu.dimension_semantics<parallel>, #tpu.dimension_semantics<parallel>], iteration_bounds = array<i64: 1, 1>, scalar_prefetch = 0 : i64, scratch_operands = 0 : i64, tpu.core_type = #tpu.core_type<tc>, window_params = [{transform_indices = @transform_0, window_bounds = array<i64: 8, 32>}, {transform_indices = @transform_1, window_bounds = array<i64: 32, 32>}, {transform_indices = @transform_2, window_bounds = array<i64: 1, 32>}, {transform_indices = @transform_3, window_bounds = array<i64: 8, 32>}]} {
    %c0 = arith.constant 0 : index
    %c0_0 = arith.constant 0 : index
    %0 = vector.load %arg2[%c0, %c0_0] : memref<8x32xf32, #tpu.memory_space<vmem>>, vector<8x32xf32>
    %1 = arith.truncf %0 : vector<8x32xf32> to vector<8x32xbf16>
    %c0_1 = arith.constant 0 : index
    %c0_2 = arith.constant 0 : index
    %2 = vector.load %arg3[%c0_1, %c0_2] : memref<32x32xbf16, #tpu.memory_space<vmem>>, vector<32x32xbf16>
    %cst = arith.constant dense<0.000000e+00> : vector<8x32xf32>
    %3 = tpu.matmul %1, %2, %cst {dimension_numbers = #tpu.dot_dimension_numbers<[1], [0], [0], [1], [0, 0, 1, 1], [], []>} : vector<8x32xbf16>, vector<32x32xbf16>, vector<8x32xf32> -> vector<8x32xf32>
    %c0_3 = arith.constant 0 : index
    %c0_4 = arith.constant 0 : index
    %4 = vector.load %arg4[%c0_3, %c0_4] : memref<1x32xf32, #tpu.memory_space<vmem>>, vector<1x32xf32>
    %5 = vector.broadcast %4 : vector<1x32xf32> to vector<8x32xf32>
    %6 = arith.addf %3, %5 : vector<8x32xf32>
    %c0_5 = arith.constant 0 : index
    %c0_6 = arith.constant 0 : index
    %7 = vector.load %arg5[%c0_5, %c0_6] : memref<8x32xf32, #tpu.memory_space<vmem>>, vector<8x32xf32>
    tpu.vector_store %arg5[%c0_5, %c0_6], %6 {strides = array<i32>} : memref<8x32xf32, #tpu.memory_space<vmem>>, vector<8x32xf32>,
    return
  }
  func.func @transform_0(%arg0: i32, %arg1: i32) -> (i32, i32) {
    %c0_i32 = arith.constant 0 : i32
    %c0_i32_0 = arith.constant 0 : i32
    return %arg0, %c0_i32 : i32, i32
  }
  func.func @transform_1(%arg0: i32, %arg1: i32) -> (i32, i32) {
    %c0_i32 = arith.constant 0 : i32
    %c0_i32_0 = arith.constant 0 : i32
    return %c0_i32, %arg1 : i32, i32
  }
  func.func @transform_2(%arg0: i32, %arg1: i32) -> (i32, i32) {
    %c0_i32 = arith.constant 0 : i32
    %c0_i32_0 = arith.constant 0 : i32
    return %c0_i32, %arg1 : i32, i32
  }
  func.func @transform_3(%arg0: i32, %arg1: i32) -> (i32, i32) {
    %c0_i32 = arith.constant 0 : i32
    return %arg0, %arg1 : i32, i32
  }
}

</mosaic_0001>

<llo_original>
// kernel: tpu_custom_call.1
$region0: #{tpu_custom_call.1}
  #allocation0 [shape = 'u32[]', space=smem, size = 0x4, offset = 0x4, fixed_abs, tag = 'smem constant byte address 0x4 - core index']
  #allocation1 [shape = 'u32[144,128]{1,0:T(1,128)}', space=vmem, size = 0x12000, scoped, tag = 'internal scratch']
  %s0 = inlined_call_operand.hbm [shape: f32[8,32], index: 0, kind: input, shape index: {}]
  %s1 = inlined_call_operand.hbm [shape: bf16[32,32], index: 1, kind: input, shape index: {}]
  %s2 = inlined_call_operand.vmem [shape: f32[1,32], index: 2, kind: input, shape index: {}]
  %s3 = inlined_call_operand.hbm [shape: f32[8,32], index: 3, kind: output, shape index: {}]
  %s4 = sld [smem:[#allocation0]]
  $region30: #{tpu_custom_call.1} parent=0
    _
  %s6 = ssub.s32 1, %s4
  %s7 = scalar_select 0, %s6, %s4
  $region1: #{tpu_custom_call.1} parent=0
    #allocation2 [shape = 'u8[4096]{0}', space=vmem, size = 0x1000, scoped, tag = 'input window, operand 0, single buffered']
    #allocation3 [shape = 's32[1]{0}', space=sflag, size = 0x4, scoped, tag = 'scoped memory for tpu_custom_call.1']
    #allocation4 [shape = 's32[1]{0}', space=sflag, size = 0x4, scoped, tag = 'scoped memory for tpu_custom_call.1']
    #allocation5 [shape = 'u8[8192]{0}', space=vmem, size = 0x2000, scoped, tag = 'input window, operand 1, single buffered']
    #allocation6 [shape = 's32[1]{0}', space=sflag, size = 0x4, scoped, tag = 'scoped memory for tpu_custom_call.1']
    #allocation7 [shape = 'u8[4096]{0}', space=vmem, size = 0x1000, scoped, tag = 'output window, operand 0, single buffered']
    %8 = vsyncpa [#allocation3], 0
    %9 = vsyncpa [#allocation6], 0
    %10 = vsyncpa [#allocation4], 0
    // Predicated region
    $region2: #{tpu_custom_call.1} parent=1 // pred_check
      _
    $region3: #{tpu_custom_call.1} parent=1 // pred_check_branch
      %12 = sbr.rel (0) target = $region5
    $region4: #{tpu_custom_call.1} parent=1 // pred_region
      %s14 = ssub.s32 128, 128
      %15 = vsyncadd [#allocation3], %s14
      %s17 = sshll.u32 [#allocation2], 4
      %s18 = int_to_ptr.vmem [resolvable:$true] %s17
      %20 = dma.hbm_to_vmem [thread:$0]  %s0, 128, %s18, [#allocation3]
    $region5: #{tpu_custom_call.1} parent=1 // pred_fallthru
      _
    // Predicated region
    $region6: #{tpu_custom_call.1} parent=1 // pred_check
      _
    $region7: #{tpu_custom_call.1} parent=1 // pred_check_branch
      %22 = sbr.rel (0) target = $region9
    $region8: #{tpu_custom_call.1} parent=1 // pred_region
      %s24 = ssub.s32 256, 256
      %25 = vsyncadd [#allocation6], %s24
      %s26 = sshll.u32 [#allocation5], 4
      %s27 = int_to_ptr.vmem [resolvable:$true] %s26
      %32 = dma.hbm_to_vmem [thread:$0]  %s1, 256, %s27, [#allocation6], 64, 64, 4
    $region9: #{tpu_custom_call.1} parent=1 // pred_fallthru
      _
    // Predicated region
    $region10: #{tpu_custom_call.1} parent=1 // pred_check
      _
    $region11: #{tpu_custom_call.1} parent=1 // pred_check_branch
      %34 = sbr.rel (0) target = $region13
    $region12: #{tpu_custom_call.1} parent=1 // pred_region
      _
    $region13: #{tpu_custom_call.1} parent=1 // pred_fallthru
      _
    // Predicated region
    $region14: #{tpu_custom_call.1} parent=1 // pred_check
      _
    $region15: #{tpu_custom_call.1} parent=1 // pred_check_branch
      %36 = sbr.rel (0) target = $region17
    $region16: #{tpu_custom_call.1} parent=1 // pred_region
      %37 = dma.done [#allocation3], 128
    $region17: #{tpu_custom_call.1} parent=1 // pred_fallthru
      _
    // Predicated region
    $region18: #{tpu_custom_call.1} parent=1 // pred_check
      _
    $region19: #{tpu_custom_call.1} parent=1 // pred_check_branch
      %39 = sbr.rel (0) target = $region21
    $region20: #{tpu_custom_call.1} parent=1 // pred_region
      %40 = dma.done [#allocation6], 256
    $region21: #{tpu_custom_call.1} parent=1 // pred_fallthru
      _
    %v42 = vld [vmem:[#allocation2] sm:$0xff]
    %v43 = vpack.c.bf16 %v42, %v42
    %v44 = vld [vmem:[#allocation5] sm:$0xf]
    %v45 = vld [vmem:[#allocation5 + $0x4] sm:$0xf]
    %v46 = vld [vmem:[#allocation5 + $0x8] sm:$0xf]
    %v47 = vld [vmem:[#allocation5 + $0xc] sm:$0xf]
    %v48 = vld [vmem:[%s2] sm:$0x1]
    %v50 = vlaneseq
    %v51 = vshrl.u32 %v50, 7
    %v52 = vsub.s32 0, %v51
    %v53 = vrot.slane %v48, %v52
    %v59 = vunpack.c.l.b16 %v44
    %v60 = vunpack.c.l.b16 %v45
    %v61 = vunpack.c.l.b16 %v46
    %v62 = vunpack.c.l.b16 %v47
    %v63 = vpack.c.b16 %v60, %v59
    %v64 = vpack.c.b16 %v62, %v61
    %vm67 = vcmask 261120
    %v69 = vsel %vm67, %v43, 0
    %71 = vmatprep.subr.bf16.mxu0 0
    %72 = vmatpush1.bf16.msra.mxu0 0
    %73 = vmatprep.subr.bf16.mxu0 0
    %74 = vmatpush1.bf16.msra.mxu0 0
    %75 = vmatprep.subr.bf16.mxu0 0
    %76 = vmatpush1.bf16.msra.mxu0 0
    %77 = vmatprep.subr.bf16.mxu0 0
    %78 = vmatpush1.bf16.msra.mxu0 0
    %79 = vmatprep.subr.bf16.mxu0 0
    %80 = vmatpush1.bf16.msra.mxu0 0
    %81 = vmatprep.subr.bf16.mxu0 0
    %82 = vmatpush1.bf16.msra.mxu0 0
    %83 = vmatprep.subr.bf16.mxu0 0
    %84 = vmatpush1.bf16.msra.mxu0 %v64
    %85 = vmatprep.subr.bf16.mxu0 0
    %86 = vmatpush1.bf16.msra.mxu0 %v63
    %87 = vmatprep.subr.bf16.mxu0 0
    %88 = vmatpush2.bf16.msra.mxu0 0
    %89 = vmatprep.subr.bf16.mxu0 0
    %90 = vmatpush2.bf16.msra.mxu0 0
    %91 = vmatprep.subr.bf16.mxu0 0
    %92 = vmatpush2.bf16.msra.mxu0 0
    %93 = vmatprep.subr.bf16.mxu0 0
    %94 = vmatpush2.bf16.msra.mxu0 0
    %95 = vmatprep.subr.bf16.mxu0 0
    %96 = vmatpush2.bf16.msra.mxu0 0
    %97 = vmatprep.subr.bf16.mxu0 0
    %98 = vmatpush2.bf16.msra.mxu0 0
    %99 = vmatprep.subr.bf16.mxu0 0
    %100 = vmatpush2.bf16.msra.mxu0 0
    %101 = vmatprep.subr.bf16.mxu0 0
    %102 = vmatpush2.bf16.msra.mxu0 0
    %103 = vmatprep.mubr.bf16.mxu0 0
    %104 = vmatmul.mubr.bf16.gmra.mxu0 %v69
    %v105 = vpop.f32.mrf.mxu0
    %v106 = vadd.f32 %v53, %v105
    %v107 = vpop.f32.mrf.mxu0
    %v108 = vpop.f32.mrf.mxu0
    %v109 = vpop.f32.mrf.mxu0
    %110 = vdwg.mxu0
    %111 = vst.msk [vmem:[#allocation7] sm:$0xff] %vm67, %v106
    // Predicated region
    $region22: #{tpu_custom_call.1} parent=1 // pred_check
      _
    $region23: #{tpu_custom_call.1} parent=1 // pred_check_branch
      %113 = sbr.rel (0) target = $region25
    $region24: #{tpu_custom_call.1} parent=1 // pred_region
      %s115 = ssub.s32 128, 128
      %116 = vsyncadd [#allocation4], %s115
      %s118 = sshll.u32 [#allocation7], 4
      %s119 = int_to_ptr.vmem [resolvable:$true] %s118
      %121 = dma.vmem_to_hbm [thread:$0]  %s119, 128, %s3, [#allocation4]
    $region25: #{tpu_custom_call.1} parent=1 // pred_fallthru
      _
    // Predicated region
    $region26: #{tpu_custom_call.1} parent=1 // pred_check
      _
    $region27: #{tpu_custom_call.1} parent=1 // pred_check_branch
      %123 = sbr.rel (0) target = $region29
    $region28: #{tpu_custom_call.1} parent=1 // pred_region
      %124 = dma.done [#allocation4], 128
    $region29: #{tpu_custom_call.1} parent=1 // pred_fallthru
      _
    %125 = vsyncpa [#allocation3], 1
    %126 = vsyncpa [#allocation6], 1
    %127 = vsyncpa [#allocation4], 1

</llo_original>
